<compile_context>
chip_gen: v7x
topology: tpu7x:2x2x1
jax: 0.10.0
libtpu: 0.0.40
codegen_flags: <defaults>
</compile_context>

<pallas_src>
import functools
import math

import numpy as np
import jax
import jax.numpy as jnp
from jax.experimental import pallas as pl
from jax.experimental.pallas import tpu as pltpu


# ----------------------------------------------------------------------------
# Kernel 1: fused conv(as matmul over im2col patches) + bias + ReLU + adaptive
#           average pool (expressed as a pooling-matrix matmul), one batch
#           element per grid step.  Negligible cost at this problem size.
# ----------------------------------------------------------------------------
def _conv_relu_pool_kernel(patch_ref, w_ref, b_ref, pool_ref, o_ref):
    # patch_ref: (1, H*W, 9*Cin)   w_ref: (9*Cin, Cout)   b_ref: (1, Cout)
    # pool_ref:  (49, H*W)         o_ref: (1, 49, Cout)
    y = jnp.dot(patch_ref[0], w_ref[...], preferred_element_type=jnp.float32)
    y = jnp.maximum(y + b_ref[...], 0.0)                       # conv bias + ReLU
    o_ref[0] = jnp.dot(pool_ref[...], y,                       # adaptive avg-pool
                       preferred_element_type=jnp.float32).astype(o_ref.dtype)


def conv_relu_pool(patches, w_flat, bias, pool_mat):
    n, hw, kc = patches.shape
    cout = w_flat.shape[1]
    p = pool_mat.shape[0]
    return pl.pallas_call(
        _conv_relu_pool_kernel,
        # bf16 output: activations go straight into the bf16 classifier matmuls,
        # eliminating a wrapper-side astype launch.
        out_shape=jax.ShapeDtypeStruct((n, p, cout), jnp.bfloat16),
        grid_spec=pltpu.PrefetchScalarGridSpec(
            num_scalar_prefetch=0,
            grid=(n,),
            in_specs=[
                pl.BlockSpec((1, hw, kc), lambda b: (b, 0, 0)),
                pl.BlockSpec((kc, cout), lambda b: (0, 0)),
                pl.BlockSpec((1, cout), lambda b: (0, 0)),
                pl.BlockSpec((p, hw), lambda b: (0, 0)),
            ],
            out_specs=pl.BlockSpec((1, p, cout), lambda b: (b, 0, 0)),
        ),
        compiler_params=pltpu.CompilerParams(dimension_semantics=("parallel",)),
    )(patches, w_flat, bias, pool_mat)


# ----------------------------------------------------------------------------
# Kernel 2: tiled Linear  y = (x @ W_int8) * scale + b  (optional fused ReLU).
#           int8 weights are streamed from HBM (half the bytes of bf16) and cast
#           to bf16 in-kernel (lossless for int8 values); the MXU does a native
#           bf16 x bf16 matmul with f32 accumulation in a small VMEM scratch.
#           Grid is (N_tiles, K_tiles) with the K reduction innermost; the
#           per-output-channel dequant scale + bias (+ReLU) are applied once at
#           the last K step, and the result is stored in the output dtype
#           (bf16 for fc1/fc2, f32 for fc3).
# ----------------------------------------------------------------------------
def _linear_kernel(x_ref, w_ref, s_ref, b_ref, o_ref, acc_ref, *, relu):
    k = pl.program_id(1)

    @pl.when(k == 0)
    def _():
        acc_ref[...] = jnp.zeros_like(acc_ref)

    # int8 -> bf16 is exact (|w_q| <= 127), so the dot equals x @ w_q in f32.
    w = w_ref[...].astype(jnp.bfloat16)
    acc_ref[...] += jnp.dot(x_ref[...], w, preferred_element_type=jnp.float32)

    @pl.when(k == pl.num_programs(1) - 1)
    def _():
        y = acc_ref[...] * s_ref[...] + b_ref[...]   # per-output-channel dequant + bias
        if relu:
            y = jnp.maximum(y, 0.0)
        o_ref[...] = y.astype(o_ref.dtype)


def _vmem_limit_bytes(m, tk, tn):
    # Double-buffered int8 weight tile dominates; everything else is tiny.
    w_bytes = 2 * tk * tn                 # int8 weights, double buffered
    x_bytes = 2 * m * tk * 2              # bf16 activations, double buffered
    o_bytes = 2 * m * tn * 4              # output block (worst case f32)
    misc = 2 * 2 * tn * 4                 # scale + bias, double buffered
    acc = m * tn * 4                      # f32 accumulator scratch
    return int(w_bytes + x_bytes + o_bytes + misc + acc + 16 * 1024 * 1024)


def linear_int8(x, w_q, scale, b, *, relu, tk, tn, out_dtype):
    m, k_dim = x.shape
    k_dim2, n_dim = w_q.shape
    assert k_dim == k_dim2
    tn = min(tn, n_dim)
    tk = min(tk, k_dim)
    assert k_dim % tk == 0 and n_dim % tn == 0
    bias2d = b.reshape(1, n_dim).astype(jnp.float32)
    scale2d = scale.reshape(1, n_dim).astype(jnp.float32)
    grid = (n_dim // tn, k_dim // tk)

    out_bytes = jnp.dtype(out_dtype).itemsize
    cost = pl.CostEstimate(
        flops=2 * m * k_dim * n_dim,
        transcendentals=0,
        bytes_accessed=(k_dim * n_dim          # int8 weight stream (dominant)
                        + m * k_dim * 2        # bf16 activations
                        + m * n_dim * out_bytes
                        + 2 * n_dim * 4),      # scale + bias
    )

    return pl.pallas_call(
        functools.partial(_linear_kernel, relu=relu),
        out_shape=jax.ShapeDtypeStruct((m, n_dim), out_dtype),
        grid_spec=pltpu.PrefetchScalarGridSpec(
            num_scalar_prefetch=0,
            grid=grid,
            in_specs=[
                pl.BlockSpec((m, tk), lambda n, k: (0, k)),      # x (bf16)
                pl.BlockSpec((tk, tn), lambda n, k: (k, n)),     # W (int8)
                pl.BlockSpec((1, tn), lambda n, k: (0, n)),      # scale (f32)
                pl.BlockSpec((1, tn), lambda n, k: (0, n)),      # bias (f32)
            ],
            out_specs=pl.BlockSpec((m, tn), lambda n, k: (0, n)),
            scratch_shapes=[pltpu.VMEM((m, tn), jnp.float32)],
        ),
        compiler_params=pltpu.CompilerParams(
            dimension_semantics=("parallel", "arbitrary"),
            vmem_limit_bytes=_vmem_limit_bytes(m, tk, tn),
        ),
        cost_estimate=cost,
    )(x, w_q, scale2d, bias2d)


# ----------------------------------------------------------------------------
# Generation-conditional tile selection.
# ----------------------------------------------------------------------------
def _single_tensorcore_chip():
    """True for v5e / v6e (1 TC, 128 MiB VMEM) -> use full-width N tiles.
    False (conservative default) keeps >= 2 N-tiles so v7x's two TensorCores
    both get grid slices and VMEM stays within 64 MiB."""
    try:
        kind = jax.devices()[0].device_kind.lower()
    except Exception:
        return False
    return any(tag in kind for tag in ("v5 lite", "v5e", "v5litepod", "v6 lite", "v6e"))


# ----------------------------------------------------------------------------
# Parameter init (mirrors Vgg_._initialize_weights) and forward glue.
# ----------------------------------------------------------------------------
def build_pool_matrix(h, w, oh, ow):
    """AdaptiveAvgPool2d((oh, ow)) as a (oh*ow, h*w) averaging matrix."""
    p = np.zeros((oh * ow, h * w), np.float32)
    for i in range(oh):
        h0, h1 = (i * h) // oh, -((-(i + 1) * h) // oh)
        for j in range(ow):
            w0, w1 = (j * w) // ow, -((-(j + 1) * w) // ow)
            s = 1.0 / ((h1 - h0) * (w1 - w0))
            for hh in range(h0, h1):
                for ww in range(w0, w1):
                    p[i * ow + j, hh * w + ww] = s
    return jnp.asarray(p)


def _quantize_per_out_channel(w):
    """Symmetric int8 quantization with one f32 scale per output column."""
    amax = jnp.max(jnp.abs(w), axis=0, keepdims=True)          # (1, N)
    scale = jnp.where(amax > 0, amax / 127.0, 1.0).astype(jnp.float32)
    w_q = jnp.clip(jnp.round(w / scale), -127.0, 127.0).astype(jnp.int8)
    return w_q, scale


def init_params(key, cin=3, cout=512, num_classes=10):
    ks = jax.random.split(key, 4)
    # Conv2d: kaiming_normal_(mode='fan_out') -> std = sqrt(2 / (Cout*kh*kw)); bias = 0
    conv_std = math.sqrt(2.0 / (cout * 3 * 3))
    conv_w = jax.random.normal(ks[0], (3, 3, cin, cout), jnp.float32) * conv_std
    conv_b = jnp.zeros((cout,), jnp.float32)

    # Linear: normal(0, 0.01), bias = 0 (stored as (in, out)).  Weights are kept in
    # int8 + per-output-channel f32 scale so the HBM-bound classifier streams half
    # the bytes of bf16 (quarter of f32).
    fc1 = jax.random.normal(ks[1], (cout * 7 * 7, 4096), jnp.float32) * 0.01
    fc2 = jax.random.normal(ks[2], (4096, 4096), jnp.float32) * 0.01
    fc3 = jax.random.normal(ks[3], (4096, num_classes), jnp.float32) * 0.01

    # fc3: pad the tiny N=num_classes dim up to a multiple of 128 for lane-dense stores.
    n_pad = ((num_classes + 127) // 128) * 128
    fc3 = jnp.pad(fc3, ((0, 0), (0, n_pad - num_classes)))

    fc1_wq, fc1_s = _quantize_per_out_channel(fc1)
    fc2_wq, fc2_s = _quantize_per_out_channel(fc2)
    fc3_wq, fc3_s = _quantize_per_out_channel(fc3)

    return dict(
        conv_w=conv_w, conv_b=conv_b,
        fc1_wq=fc1_wq, fc1_s=fc1_s, fc1_b=jnp.zeros((4096,), jnp.float32),
        fc2_wq=fc2_wq, fc2_s=fc2_s, fc2_b=jnp.zeros((4096,), jnp.float32),
        fc3_wq=fc3_wq, fc3_s=fc3_s, fc3_b=jnp.zeros((n_pad,), jnp.float32),
        num_classes=num_classes,
    )


def vgg_forward(x_nchw, params):
    # layout: NCHW in (PyTorch convention) -> NHWC internally for the TPU kernels.
    x = jnp.transpose(x_nchw, (0, 2, 3, 1)).astype(jnp.float32)   # (N, H, W, Cin)
    n, h, w, cin = x.shape
    cout = params["conv_w"].shape[-1]
    num_classes = params["num_classes"]

    # --- features: Conv2d(cin, 512, 3, padding=1) + ReLU (conv via im2col matmul) ---
    # TODO(synk): `features` is an injected submodule in the PyTorch spec; here it is
    # the minimal VGG-style Conv2d(3, 512, k=3, pad=1) + ReLU so the classifier's
    # hard-coded 512*7*7 input dimension is respected.
    xp = jnp.pad(x, ((0, 0), (1, 1), (1, 1), (0, 0)))
    patches = jnp.stack(
        [xp[:, dy:dy + h, dx:dx + w, :] for dy in range(3) for dx in range(3)],
        axis=3)                                                    # (N, H, W, 9, Cin)
    patches = patches.reshape(n, h * w, 9 * cin)
    w_flat = params["conv_w"].reshape(9 * cin, cout)               # (dy, dx, cin)-major

    # --- avgpool: AdaptiveAvgPool2d((7,7)) fused into the conv kernel as a matmul ---
    pool_mat = build_pool_matrix(h, w, 7, 7)                       # (49, H*W)
    pooled = conv_relu_pool(patches, w_flat,
                            params["conv_b"].reshape(1, cout), pool_mat)  # (N,49,Cout) bf16

    # --- flatten (matches torch.flatten on NCHW: channel-major, then spatial) ---
    feat = jnp.transpose(pooled, (0, 2, 1)).reshape(n, cout * 49)  # (N, 25088) bf16

    # --- classifier (int8 weight streaming, bf16 MXU dot, f32 accumulation) ---
    # Generation-conditional tiling: full-width N on single-TC v5e/v6e; >=2 N-tiles
    # elsewhere (v7x) so both TensorCores stream weights and VMEM stays < 64 MiB.
    if _single_tensorcore_chip():
        fc1_tiles = dict(tk=3584, tn=4096)   # 7 K-steps, 1 N-tile
        fc2_tiles = dict(tk=4096, tn=4096)   # single step
    else:
        fc1_tiles = dict(tk=3584, tn=2048)   # (2 n-tiles) x (7 k-steps)
        fc2_tiles = dict(tk=4096, tn=2048)   # 2 n-tiles x 1 k-step

    h1 = linear_int8(feat, params["fc1_wq"], params["fc1_s"], params["fc1_b"],
                     relu=True, out_dtype=jnp.bfloat16, **fc1_tiles)
    # TODO(synk): Dropout layers are identity here (inference/eval semantics).
    h2 = linear_int8(h1, params["fc2_wq"], params["fc2_s"], params["fc2_b"],
                     relu=True, out_dtype=jnp.bfloat16, **fc2_tiles)

    n_pad = params["fc3_wq"].shape[1]
    out = linear_int8(h2, params["fc3_wq"], params["fc3_s"], params["fc3_b"],
                      relu=False, out_dtype=jnp.float32, tk=4096, tn=n_pad)
    return out[:, :num_classes]


if __name__ == "__main__":
    key = jax.random.PRNGKey(0)
    k_param, k_x = jax.random.split(key)
    params = init_params(k_param, cin=3, cout=512, num_classes=10)

    # Small input: batch=2, channels=3, spatial=14 (pooled adaptively to 7x7).
    x = jax.random.normal(k_x, (2, 3, 14, 14), jnp.float32)

    logits = vgg_forward(x, params)
    jax.block_until_ready(logits)
    assert logits.shape == (2, 10) and logits.dtype == jnp.float32
    assert bool(jnp.all(jnp.isfinite(logits)))
    print("KERNEL_OK")
</pallas_src>

<mosaic_0001>
module attributes {stable_mosaic.version = 11 : i64} {
  func.func @_conv_relu_pool_kernel(%arg0: i32, %arg1: memref<1x196x27xf32, #tpu.memory_space<vmem>>, %arg2: memref<27x512xf32, #tpu.memory_space<vmem>>, %arg3: memref<1x512xf32, #tpu.memory_space<vmem>>, %arg4: memref<49x196xf32, #tpu.memory_space<vmem>>, %arg5: memref<1x49x512xbf16, #tpu.memory_space<vmem>>) attributes {dimension_semantics = [#tpu.dimension_semantics<parallel>], iteration_bounds = array<i64: 2>, scalar_prefetch = 0 : i64, scratch_operands = 0 : i64, tpu.core_type = #tpu.core_type<tc>, window_params = [{transform_indices = @transform_0, window_bounds = array<i64: 1, 196, 27>}, {pipeline_mode = #tpu.pipeline_mode<synchronous>, transform_indices = @transform_1, window_bounds = array<i64: 27, 512>}, {pipeline_mode = #tpu.pipeline_mode<synchronous>, transform_indices = @transform_2, window_bounds = array<i64: 1, 512>}, {pipeline_mode = #tpu.pipeline_mode<synchronous>, transform_indices = @transform_3, window_bounds = array<i64: 49, 196>}, {transform_indices = @transform_4, window_bounds = array<i64: 1, 49, 512>}]} {
    %c0 = arith.constant 0 : index
    %c0_0 = arith.constant 0 : index
    %c0_1 = arith.constant 0 : index
    %0 = vector.load %arg1[%c0, %c0_0, %c0_1] : memref<1x196x27xf32, #tpu.memory_space<vmem>>, vector<1x196x27xf32>
    %1 = vector.shape_cast %0 : vector<1x196x27xf32> to vector<196x27xf32>
    %c0_2 = arith.constant 0 : index
    %c0_3 = arith.constant 0 : index
    %2 = vector.load %arg2[%c0_2, %c0_3] : memref<27x512xf32, #tpu.memory_space<vmem>>, vector<27x512xf32>
    %cst = arith.constant dense<0.000000e+00> : vector<196x512xf32>
    %3 = tpu.matmul %1, %2, %cst {dimension_numbers = #tpu.dot_dimension_numbers<[1], [0], [0], [1], [0, 0, 1, 1], [], []>} : vector<196x27xf32>, vector<27x512xf32>, vector<196x512xf32> -> vector<196x512xf32>
    %c0_4 = arith.constant 0 : index
    %c0_5 = arith.constant 0 : index
    %4 = vector.load %arg3[%c0_4, %c0_5] : memref<1x512xf32, #tpu.memory_space<vmem>>, vector<1x512xf32>
    %5 = vector.broadcast %4 : vector<1x512xf32> to vector<196x512xf32>
    %6 = arith.addf %3, %5 : vector<196x512xf32>
    %cst_6 = arith.constant 0.000000e+00 : f32
    %7 = vector.broadcast %cst_6 : f32 to vector<196x512xf32>
    %8 = arith.maximumf %6, %7 : vector<196x512xf32>
    %c0_7 = arith.constant 0 : index
    %c0_8 = arith.constant 0 : index
    %9 = vector.load %arg4[%c0_7, %c0_8] : memref<49x196xf32, #tpu.memory_space<vmem>>, vector<49x196xf32>
    %cst_9 = arith.constant dense<0.000000e+00> : vector<49x512xf32>
    %10 = tpu.matmul %9, %8, %cst_9 {dimension_numbers = #tpu.dot_dimension_numbers<[1], [0], [0], [1], [0, 0, 1, 1], [], []>} : vector<49x196xf32>, vector<196x512xf32>, vector<49x512xf32> -> vector<49x512xf32>
    %11 = arith.truncf %10 : vector<49x512xf32> to vector<49x512xbf16>
    %c0_10 = arith.constant 0 : index
    %c0_11 = arith.constant 0 : index
    %c0_12 = arith.constant 0 : index
    %12 = vector.load %arg5[%c0_10, %c0_11, %c0_12] : memref<1x49x512xbf16, #tpu.memory_space<vmem>>, vector<1x49x512xbf16>
    %13 = vector.shape_cast %12 : vector<1x49x512xbf16> to vector<49x512xbf16>
    %14 = vector.shape_cast %11 : vector<49x512xbf16> to vector<1x49x512xbf16>
    tpu.vector_store %arg5[%c0_10, %c0_11, %c0_12], %14 {strides = array<i32>} : memref<1x49x512xbf16, #tpu.memory_space<vmem>>, vector<1x49x512xbf16>,
    return
  }
  func.func @transform_0(%arg0: i32) -> (i32, i32, i32) {
    %c0_i32 = arith.constant 0 : i32
    %c0_i32_0 = arith.constant 0 : i32
    %c0_i32_1 = arith.constant 0 : i32
    return %arg0, %c0_i32, %c0_i32_0 : i32, i32, i32
  }
  func.func @transform_1(%arg0: i32) -> (i32, i32) {
    %c0_i32 = arith.constant 0 : i32
    %c0_i32_0 = arith.constant 0 : i32
    %c0_i32_1 = arith.constant 0 : i32
    return %c0_i32, %c0_i32_0 : i32, i32
  }
  func.func @transform_2(%arg0: i32) -> (i32, i32) {
    %c0_i32 = arith.constant 0 : i32
    %c0_i32_0 = arith.constant 0 : i32
    %c0_i32_1 = arith.constant 0 : i32
    return %c0_i32, %c0_i32_0 : i32, i32
  }
  func.func @transform_3(%arg0: i32) -> (i32, i32) {
    %c0_i32 = arith.constant 0 : i32
    %c0_i32_0 = arith.constant 0 : i32
    %c0_i32_1 = arith.constant 0 : i32
    return %c0_i32, %c0_i32_0 : i32, i32
  }
  func.func @transform_4(%arg0: i32) -> (i32, i32, i32) {
    %c0_i32 = arith.constant 0 : i32
    %c0_i32_0 = arith.constant 0 : i32
    %c0_i32_1 = arith.constant 0 : i32
    return %arg0, %c0_i32, %c0_i32_0 : i32, i32, i32
  }
}

</mosaic_0001>

<llo_original>
// kernel: tpu_custom_call.1
$region0: #{tpu_custom_call.1}
  #allocation0 [shape = 'u32[]', space=smem, size = 0x4, offset = 0x4, fixed_abs, tag = 'smem constant byte address 0x4 - core index']
  #allocation1 [shape = 'u32[144,128]{1,0:T(1,128)}', space=vmem, size = 0x12000, scoped, tag = 'internal scratch']
  %s0 = inlined_call_operand.vmem [shape: f32[2,196,27], index: 0, kind: input, shape index: {}]
  %s1 = inlined_call_operand.vmem [shape: f32[27,512], index: 1, kind: input, shape index: {}]
  %s2 = inlined_call_operand.vmem [shape: f32[1,512], index: 2, kind: input, shape index: {}]
  %s3 = inlined_call_operand.vmem [shape: f32[49,196], index: 3, kind: input, shape index: {}]
  %s4 = inlined_call_operand.vmem [shape: bf16[2,49,512], index: 4, kind: output, shape index: {}]
  %s5 = sld [smem:[#allocation0]]
  $region49: #{tpu_custom_call.1} parent=0
    _
  %s7 = ssub.s32 1, %s5
  %s8 = scalar_select 0, %s7, %s5
  loop: start=0, step=1, limit=4
  $region2: #{tpu_custom_call.1} parent=0 // loop_pre_header
    _
  $region3: #{tpu_custom_call.1} parent=0 // loop_header
    %s10 = sphi 0, %s14
    %p11 = scmp.ge.s32.totalorder %s10, 4
    %s20 = sphi 0, %s22
    %s23 = sphi 0, %s20
    %s24 = sphi 0, %s23
    %s40 = sphi 0, %s24
    %s44 = sphi 0, %s44
    %s46 = sphi 0, %s44
    %s47 = sphi 0, %s46
    %s61 = sphi 0, %s47
    %s65 = sphi 0, %s65
    %s67 = sphi 0, %s65
    %s68 = sphi 0, %s67
    %s82 = sphi 0, %s68
    %s86 = sphi 0, %s86
    %s88 = sphi 0, %s86
    %s89 = sphi 0, %s88
    %s103 = sphi 0, %s89
    %s109 = sphi 0, %s111
    %s112 = sphi 0, %s109
    %s113 = sphi 0, %s112
    %s129 = sphi 0, %s113
  $region4: #{tpu_custom_call.1} parent=0 // loop_header_branch
    %13 = sbr.rel (%p11) target = $region8
  $region5: #{tpu_custom_call.1} parent=0 // loop_body
    %s15 = ssub.s32 %s10, 1
    %s16 = ssub.s32 %s10, 2
    %s17 = sadd.s32 %s10, 1
    %s18 = ssub.s32 %s10, %s17
    %p19 = scmp.eq.s32.totalorder %s18, 0
    %s21 = sadd.s32 %s20, 1
    %s22 = scalar_select %p19, %s20, %s21
    %p25 = pneg %p19
    %p26 = scmp.eq.s32.totalorder %s10, 1
    %p27 = por %p25, %p26
    %p28 = scmp.ne.s32.totalorder %s20, %s23
    %p29 = scmp.eq.s32.totalorder %s10, 0
    %p30 = por %p28, %p29
    %p31 = scmp.ne.s32.totalorder %s20, %s23
    %p32 = scmp.eq.s32.totalorder %s15, 1
    %p33 = por %p31, %p32
    %p34 = scmp.ne.s32.totalorder %s23, %s24
    %p35 = scmp.eq.s32.totalorder %s15, 0
    %p36 = por %p34, %p35
    %p37 = scmp.ne.s32.totalorder %s23, %s24
    %p38 = scmp.eq.s32.totalorder %s16, 1
    %p39 = por %p37, %p38
    %p41 = scmp.ne.s32.totalorder %s24, %s40
    %p42 = scmp.eq.s32.totalorder %s16, 0
    %p43 = por %p41, %p42
    %s45 = sadd.s32 %s44, 1
    %p48 = scmp.eq.s32.totalorder %s10, 1
    %p49 = scmp.ne.s32.totalorder %s44, %s46
    %p50 = scmp.eq.s32.totalorder %s10, 0
    %p51 = por %p49, %p50
    %p52 = scmp.ne.s32.totalorder %s44, %s46
    %p53 = scmp.eq.s32.totalorder %s15, 1
    %p54 = por %p52, %p53
    %p55 = scmp.ne.s32.totalorder %s46, %s47
    %p56 = scmp.eq.s32.totalorder %s15, 0
    %p57 = por %p55, %p56
    %p58 = scmp.ne.s32.totalorder %s46, %s47
    %p59 = scmp.eq.s32.totalorder %s16, 1
    %p60 = por %p58, %p59
    %p62 = scmp.ne.s32.totalorder %s47, %s61
    %p63 = scmp.eq.s32.totalorder %s16, 0
    %p64 = por %p62, %p63
    %s66 = sadd.s32 %s65, 1
    %p69 = scmp.eq.s32.totalorder %s10, 1
    %p70 = scmp.ne.s32.totalorder %s65, %s67
    %p71 = scmp.eq.s32.totalorder %s10, 0
    %p72 = por %p70, %p71
    %p73 = scmp.ne.s32.totalorder %s65, %s67
    %p74 = scmp.eq.s32.totalorder %s15, 1
    %p75 = por %p73, %p74
    %p76 = scmp.ne.s32.totalorder %s67, %s68
    %p77 = scmp.eq.s32.totalorder %s15, 0
    %p78 = por %p76, %p77
    %p79 = scmp.ne.s32.totalorder %s67, %s68
    %p80 = scmp.eq.s32.totalorder %s16, 1
    %p81 = por %p79, %p80
    %p83 = scmp.ne.s32.totalorder %s68, %s82
    %p84 = scmp.eq.s32.totalorder %s16, 0
    %p85 = por %p83, %p84
    %s87 = sadd.s32 %s86, 1
    %p90 = scmp.eq.s32.totalorder %s10, 1
    %p91 = scmp.ne.s32.totalorder %s86, %s88
    %p92 = scmp.eq.s32.totalorder %s10, 0
    %p93 = por %p91, %p92
    %p94 = scmp.ne.s32.totalorder %s86, %s88
    %p95 = scmp.eq.s32.totalorder %s15, 1
    %p96 = por %p94, %p95
    %p97 = scmp.ne.s32.totalorder %s88, %s89
    %p98 = scmp.eq.s32.totalorder %s15, 0
    %p99 = por %p97, %p98
    %p100 = scmp.ne.s32.totalorder %s88, %s89
    %p101 = scmp.eq.s32.totalorder %s16, 1
    %p102 = por %p100, %p101
    %p104 = scmp.ne.s32.totalorder %s89, %s103
    %p105 = scmp.eq.s32.totalorder %s16, 0
    %p106 = por %p104, %p105
    %s107 = ssub.s32 %s10, %s17
    %p108 = scmp.eq.s32.totalorder %s107, 0
    %s110 = sadd.s32 %s109, 1
    %s111 = scalar_select %p108, %s109, %s110
    %p114 = pneg %p108
    %p115 = scmp.eq.s32.totalorder %s10, 1
    %p116 = por %p114, %p115
    %p117 = scmp.ne.s32.totalorder %s109, %s112
    %p118 = scmp.eq.s32.totalorder %s10, 0
    %p119 = por %p117, %p118
    %p120 = scmp.ne.s32.totalorder %s109, %s112
    %p121 = scmp.eq.s32.totalorder %s15, 1
    %p122 = por %p120, %p121
    %p123 = scmp.ne.s32.totalorder %s112, %s113
    %p124 = scmp.eq.s32.totalorder %s15, 0
    %p125 = por %p123, %p124
    %p126 = scmp.ne.s32.totalorder %s112, %s113
    %p127 = scmp.eq.s32.totalorder %s16, 1
    %p128 = por %p126, %p127
    %p130 = scmp.ne.s32.totalorder %s113, %s129
    %p131 = scmp.eq.s32.totalorder %s16, 0
    %p132 = por %p130, %p131
    %p133 = scmp.le.s32.totalorder 1, %s10
    %p134 = scmp.lt.s32.totalorder %s10, 3
    %p135 = pnand %p133, %p134
    %p136 = pneg %p135
    // Predicated region
    $region9: #{tpu_custom_call.1} parent=5 // pred_check
      _
    $region10: #{tpu_custom_call.1} parent=5 // pred_check_branch
      %138 = sbr.rel (%p135) target = $region12
    $region11: #{tpu_custom_call.1} parent=5 // pred_region
      %s139 = ssub.s32 %s10, 1
      // Predicated region
      $region13: #{tpu_custom_call.1} parent=11 // pred_check
        %p140 = pneg %p57
      $region14: #{tpu_custom_call.1} parent=11 // pred_check_branch
        %142 = sbr.rel (%p140) target = $region16
      $region15: #{tpu_custom_call.1} parent=11 // pred_region
        _
      $region16: #{tpu_custom_call.1} parent=11 // pred_fallthru
        _
      // Predicated region
      $region17: #{tpu_custom_call.1} parent=11 // pred_check
        %p143 = pneg %p78
      $region18: #{tpu_custom_call.1} parent=11 // pred_check_branch
        %145 = sbr.rel (%p143) target = $region20
      $region19: #{tpu_custom_call.1} parent=11 // pred_region
        _
      $region20: #{tpu_custom_call.1} parent=11 // pred_fallthru
        _
      // Predicated region
      $region21: #{tpu_custom_call.1} parent=11 // pred_check
        %p146 = pneg %p99
      $region22: #{tpu_custom_call.1} parent=11 // pred_check_branch
        %148 = sbr.rel (%p146) target = $region24
      $region23: #{tpu_custom_call.1} parent=11 // pred_region
        _
      $region24: #{tpu_custom_call.1} parent=11 // pred_fallthru
        _
    $region12: #{tpu_custom_call.1} parent=5 // pred_fallthru
      _
    %p149 = scmp.lt.s32.totalorder %s10, 2
    // Predicated region
    $region25: #{tpu_custom_call.1} parent=5 // pred_check
      %p150 = pneg %p149
    $region26: #{tpu_custom_call.1} parent=5 // pred_check_branch
      %152 = sbr.rel (%p150) target = $region28
    $region27: #{tpu_custom_call.1} parent=5 // pred_region
      // Predicated region
      $region29: #{tpu_custom_call.1} parent=27 // pred_check
        %p153 = pneg %p30
      $region30: #{tpu_custom_call.1} parent=27 // pred_check_branch
        %155 = sbr.rel (%p153) target = $region32
      $region31: #{tpu_custom_call.1} parent=27 // pred_region
        %p156 = scmp.lt.s32.totalorder %s10, 1
        %s157 = scalar_select %p156, %s10, 1
        %s158 = smul.addr %s157, 25
        %s159 = smul.addr %s158, 8
        %s160 = scalar_lea.vmem %s0, %s159
      $region32: #{tpu_custom_call.1} parent=27 // pred_fallthru
        _
    $region28: #{tpu_custom_call.1} parent=5 // pred_fallthru
      _
    %p161 = scmp.le.s32.totalorder 1, %s10
    %p162 = scmp.lt.s32.totalorder %s10, 3
    %p163 = pnand %p161, %p162
    %p164 = pneg %p163
    // Predicated region
    $region33: #{tpu_custom_call.1} parent=5 // pred_check
      _
    $region34: #{tpu_custom_call.1} parent=5 // pred_check_branch
      %166 = sbr.rel (%p163) target = $region36
    $region35: #{tpu_custom_call.1} parent=5 // pred_region
      %s167 = ssub.s32 %s10, 1
      %p168 = scmp.lt.s32.totalorder %s15, 1
      %s169 = scalar_select %p168, %s15, 1
      %s170 = smul.addr %s169, 25
      %s171 = smul.addr %s170, 8
      %s172 = scalar_lea.vmem %s0, %s171
      %p173 = pneg %p36
      %p174 = pneg %p33
      %p175 = pneg %p57
      %p176 = pneg %p54
      %p177 = pneg %p78
      %p178 = pneg %p75
      %p179 = pneg %p99
      %p180 = pneg %p96
      %p181 = pneg %p125
      %p182 = pneg %p122
      %p183 = scmp.lt.s32.totalorder %s15, 1
      %s184 = scalar_select %p183, %s15, 1
      %s185 = smul.addr %s184, 28
      %s186 = smul.addr %s185, 4
      %s187 = scalar_lea.vmem %s4, %s186
      %p188 = scmp.lt.s32.totalorder %s15, 1
      %s189 = scalar_select %p188, %s15, 1
      %s190 = smul.addr %s189, 25
      %s191 = smul.addr %s190, 8
      %s192 = scalar_lea.vmem %s0, %s191
      %p193 = scmp.lt.s32.totalorder %s15, 1
      %s194 = scalar_select %p193, %s15, 1
      %s195 = smul.addr %s194, 28
      %s196 = smul.addr %s195, 4
      %s197 = scalar_lea.vmem %s4, %s196
      %v198 = vld [vmem:[%s192] sm:$0xff]
      %v199 = vld [vmem:[%s192 + $0x8] sm:$0xff]
      %v200 = vld [vmem:[%s192 + $0x10] sm:$0xff]
      %v201 = vld [vmem:[%s192 + $0x18] sm:$0xff]
      %v202 = vld [vmem:[%s192 + $0x20] sm:$0xff]
      %v203 = vld [vmem:[%s192 + $0x28] sm:$0xff]
      %v204 = vld [vmem:[%s192 + $0x30] sm:$0xff]
      %v205 = vld [vmem:[%s192 + $0x38] sm:$0xff]
      %v206 = vld [vmem:[%s192 + $0x40] sm:$0xff]
      %v207 = vld [vmem:[%s192 + $0x48] sm:$0xff]
      %v208 = vld [vmem:[%s192 + $0x50] sm:$0xff]
      %v209 = vld [vmem:[%s192 + $0x58] sm:$0xff]
      %v210 = vld [vmem:[%s192 + $0x60] sm:$0xff]
      %v211 = vld [vmem:[%s192 + $0x68] sm:$0xff]
      %v212 = vld [vmem:[%s192 + $0x70] sm:$0xff]
      %v213 = vld [vmem:[%s192 + $0x78] sm:$0xff]
      %v214 = vld [vmem:[%s192 + $0x80] sm:$0xff]
      %v215 = vld [vmem:[%s192 + $0x88] sm:$0xff]
      %v216 = vld [vmem:[%s192 + $0x90] sm:$0xff]
      %v217 = vld [vmem:[%s192 + $0x98] sm:$0xff]
      %v218 = vld [vmem:[%s192 + $0xa0] sm:$0xff]
      %v219 = vld [vmem:[%s192 + $0xa8] sm:$0xff]
      %v220 = vld [vmem:[%s192 + $0xb0] sm:$0xff]
      %v221 = vld [vmem:[%s192 + $0xb8] sm:$0xff]
      %v222 = vld [vmem:[%s192 + $0xc0] sm:$0xf]
      %v223 = vld [vmem:[%s1] sm:$0xff]
      %v224 = vld [vmem:[%s1 + $0x8] sm:$0xff]
      %v225 = vld [vmem:[%s1 + $0x10] sm:$0xff]
      %v226 = vld [vmem:[%s1 + $0x18] sm:$0xff]
      %v227 = vld [vmem:[%s1 + $0x20] sm:$0xff]
      %v228 = vld [vmem:[%s1 + $0x28] sm:$0xff]
      %v229 = vld [vmem:[%s1 + $0x30] sm:$0xff]
      %v230 = vld [vmem:[%s1 + $0x38] sm:$0xff]
      %v231 = vld [vmem:[%s1 + $0x40] sm:$0xff]
      %v232 = vld [vmem:[%s1 + $0x48] sm:$0xff]
      %v233 = vld [vmem:[%s1 + $0x50] sm:$0xff]
      %v234 = vld [vmem:[%s1 + $0x58] sm:$0xff]
      %v235 = vld [vmem:[%s1 + $0x60] sm:$0x7]
      %v236 = vld [vmem:[%s1 + $0x68] sm:$0x7]
      %v237 = vld [vmem:[%s1 + $0x70] sm:$0x7]
      %v238 = vld [vmem:[%s1 + $0x78] sm:$0x7]
      %v239 = vld [vmem:[%s2] sm:$0xf]
      %v241 = vlaneseq
      %v242 = vshrl.u32 %v241, 7
      %v243 = vsub.s32 0, %v242
      %v244 = vrot.slane %v239, %v243
      %v245 = vlaneseq
      %v246 = vshrl.u32 %v245, 7
      %v247 = vsub.s32 1, %v246
      %v248 = vrot.slane %v239, %v247
      %v249 = vlaneseq
      %v250 = vshrl.u32 %v249, 7
      %v251 = vsub.s32 2, %v250
      %v252 = vrot.slane %v239, %v251
      %v253 = vlaneseq
      %v254 = vshrl.u32 %v253, 7
      %v255 = vsub.s32 3, %v254
      %v256 = vrot.slane %v239, %v255
      %vm261 = vcmask 220160
      %v263 = vsel %vm261, %v198, 0
      %v266 = vsel %vm261, %v199, 0
      %v269 = vsel %vm261, %v200, 0
      %v272 = vsel %vm261, %v201, 0
      %v275 = vsel %vm261, %v202, 0
      %v278 = vsel %vm261, %v203, 0
      %v281 = vsel %vm261, %v204, 0
      %v284 = vsel %vm261, %v205, 0
      %v287 = vsel %vm261, %v206, 0
      %v290 = vsel %vm261, %v207, 0
      %v293 = vsel %vm261, %v208, 0
      %v296 = vsel %vm261, %v209, 0
      %v299 = vsel %vm261, %v210, 0
      %v302 = vsel %vm261, %v211, 0
      %v305 = vsel %vm261, %v212, 0
      %v308 = vsel %vm261, %v213, 0
      %v311 = vsel %vm261, %v214, 0
      %v314 = vsel %vm261, %v215, 0
      %v317 = vsel %vm261, %v216, 0
      %v320 = vsel %vm261, %v217, 0
      %v323 = vsel %vm261, %v218, 0
      %v326 = vsel %vm261, %v219, 0
      %v329 = vsel %vm261, %v220, 0
      %v332 = vsel %vm261, %v221, 0
      %v335 = vsel %vm261, %v222, 0
      %vm337 = vcmask 1042432
      %v339 = vsel %vm337, %v235, 0
      %v342 = vsel %vm337, %v236, 0
      %v345 = vsel %vm337, %v237, 0
      %v348 = vsel %vm337, %v238, 0
      %350 = vmatprep.subr.mxu0 %v224
      %351 = vmatpush1.msra.mxu0 %v223
      %352 = vmatprep.subr.mxu0 %v228
      %353 = vmatpush1.msra.mxu0 %v227
      %354 = vmatprep.subr.mxu0 %v232
      %355 = vmatpush1.msra.mxu0 %v231
      %356 = vmatprep.subr.mxu0 %v342
      %357 = vmatpush1.msra.mxu0 %v339
      %358 = vmatprep.subr.mxu0 0.0
      %359 = vmatpush1.msra.mxu0 0.0
      %360 = vmatprep.subr.mxu0 0.0
      %361 = vmatpush1.msra.mxu0 0.0
      %362 = vmatprep.subr.mxu0 0.0
      %363 = vmatpush1.msra.mxu0 0.0
      %364 = vmatprep.subr.mxu0 0.0
      %365 = vmatpush1.msra.mxu0 0.0
      %366 = vmatprep.subr.mxu0 0.0
      %367 = vmatpush1.msra.mxu0 0.0
      %368 = vmatprep.subr.mxu0 0.0
      %369 = vmatpush1.msra.mxu0 0.0
      %370 = vmatprep.subr.mxu0 0.0
      %371 = vmatpush1.msra.mxu0 0.0
      %372 = vmatprep.subr.mxu0 0.0
      %373 = vmatpush1.msra.mxu0 0.0
      %374 = vmatprep.subr.mxu0 0.0
      %375 = vmatpush1.msra.mxu0 0.0
      %376 = vmatprep.subr.mxu0 0.0
      %377 = vmatpush1.msra.mxu0 0.0
      %378 = vmatprep.subr.mxu0 0.0
      %379 = vmatpush1.msra.mxu0 0.0
      %380 = vmatprep.subr.mxu0 0.0
      %381 = vmatpush1.msra.mxu0 0.0
      %382 = vmatprep.subr.mxu0 0.0
      %383 = vmatpush1.msra.mxu0 0.0
      %384 = vmatprep.subr.mxu0 0.0
      %385 = vmatpush1.msra.mxu0 0.0
      %386 = vmatprep.subr.mxu0 0.0
      %387 = vmatpush1.msra.mxu0 0.0
      %388 = vmatprep.subr.mxu0 0.0
      %389 = vmatpush1.msra.mxu0 0.0
      %390 = vmatprep.subr.mxu0 0.0
      %391 = vmatpush1.msra.mxu0 0.0
      %392 = vmatprep.subr.mxu0 0.0
      %393 = vmatpush1.msra.mxu0 0.0
      %394 = vmatprep.subr.mxu0 0.0
      %395 = vmatpush1.msra.mxu0 0.0
      %396 = vmatprep.subr.mxu0 0.0
      %397 = vmatpush1.msra.mxu0 0.0
      %398 = vmatprep.subr.mxu0 0.0
      %399 = vmatpush1.msra.mxu0 0.0
      %400 = vmatprep.subr.mxu0 0.0
      %401 = vmatpush1.msra.mxu0 0.0
      %402 = vmatprep.subr.mxu0 0.0
      %403 = vmatpush1.msra.mxu0 0.0
      %404 = vmatprep.subr.mxu0 0.0
      %405 = vmatpush1.msra.mxu0 0.0
      %406 = vmatprep.subr.mxu0 0.0
      %407 = vmatpush1.msra.mxu0 0.0
      %408 = vmatprep.subr.mxu0 0.0
      %409 = vmatpush1.msra.mxu0 0.0
      %410 = vmatprep.subr.mxu0 0.0
      %411 = vmatpush1.msra.mxu0 0.0
      %412 = vmatprep.subr.mxu0 0.0
      %413 = vmatpush1.msra.mxu0 0.0
      %414 = vmatprep.mubr.f32.mxu0 0.0
      %415 = vmatmul.mubr.f32.gmra.mrb[0].mxu0 %v263
      %v416 = vpop.f32.mrb[0].mxu0
      %v417 = vadd.f32 %v244, %v416
      %v418 = vpop.f32.mrb[0].mxu0
      %v419 = vadd.f32 %v248, %v418
      %420 = vmatprep.mubr.f32.mxu0 0.0
      %421 = vmatmul.mubr.f32.gmra.mrb[0].mxu0 %v266
      %v422 = vpop.f32.mrb[0].mxu0
      %v423 = vadd.f32 %v244, %v422
      %v424 = vpop.f32.mrb[0].mxu0
      %v425 = vadd.f32 %v248, %v424
      %426 = vmatprep.mubr.f32.mxu0 0.0
      %427 = vmatmul.mubr.f32.gmra.mrb[0].mxu0 %v269
      %v428 = vpop.f32.mrb[0].mxu0
      %v429 = vadd.f32 %v244, %v428
      %v430 = vpop.f32.mrb[0].mxu0
      %v431 = vadd.f32 %v248, %v430
      %432 = vmatprep.mubr.f32.mxu0 0.0
      %433 = vmatmul.mubr.f32.gmra.mrb[0].mxu0 %v272
      %v434 = vpop.f32.mrb[0].mxu0
      %v435 = vadd.f32 %v244, %v434
      %v436 = vpop.f32.mrb[0].mxu0
      %v437 = vadd.f32 %v248, %v436
      %438 = vmatprep.mubr.f32.mxu0 0.0
      %439 = vmatmul.mubr.f32.gmra.mrb[0].mxu0 %v275
      %v440 = vpop.f32.mrb[0].mxu0
      %v441 = vadd.f32 %v244, %v440
      %v442 = vpop.f32.mrb[0].mxu0
      %v443 = vadd.f32 %v248, %v442
      %444 = vmatprep.mubr.f32.mxu0 0.0
      %445 = vmatmul.mubr.f32.gmra.mrb[0].mxu0 %v278
      %v446 = vpop.f32.mrb[0].mxu0
      %v447 = vadd.f32 %v244, %v446
      %v448 = vpop.f32.mrb[0].mxu0
      %v449 = vadd.f32 %v248, %v448
      %450 = vmatprep.mubr.f32.mxu0 0.0
      %451 = vmatmul.mubr.f32.gmra.mrb[0].mxu0 %v281
      %v452 = vpop.f32.mrb[0].mxu0
      %v453 = vadd.f32 %v244, %v452
      %v454 = vpop.f32.mrb[0].mxu0
      %v455 = vadd.f32 %v248, %v454
      %456 = vmatprep.mubr.f32.mxu0 0.0
      %457 = vmatmul.mubr.f32.gmra.mrb[0].mxu0 %v284
      %v458 = vpop.f32.mrb[0].mxu0
      %v459 = vadd.f32 %v244, %v458
      %v460 = vpop.f32.mrb[0].mxu0
      %v461 = vadd.f32 %v248, %v460
      %462 = vmatprep.mubr.f32.mxu0 0.0
      %463 = vmatmul.mubr.f32.gmra.mrb[0].mxu0 %v287
      %v464 = vpop.f32.mrb[0].mxu0
      %v465 = vadd.f32 %v244, %v464
      %v466 = vpop.f32.mrb[0].mxu0
      %v467 = vadd.f32 %v248, %v466
      %468 = vmatprep.mubr.f32.mxu0 0.0
      %469 = vmatmul.mubr.f32.gmra.mrb[0].mxu0 %v290
      %v470 = vpop.f32.mrb[0].mxu0
      %v471 = vadd.f32 %v244, %v470
      %v472 = vpop.f32.mrb[0].mxu0
      %v473 = vadd.f32 %v248, %v472
      %474 = vmatprep.mubr.f32.mxu0 0.0
      %475 = vmatmul.mubr.f32.gmra.mrb[0].mxu0 %v293
      %v476 = vpop.f32.mrb[0].mxu0
      %v477 = vadd.f32 %v244, %v476
      %v478 = vpop.f32.mrb[0].mxu0
      %v479 = vadd.f32 %v248, %v478
      %480 = vmatprep.mubr.f32.mxu0 0.0
      %481 = vmatmul.mubr.f32.gmra.mrb[0].mxu0 %v296
      %v482 = vpop.f32.mrb[0].mxu0
      %v483 = vadd.f32 %v244, %v482
      %v484 = vpop.f32.mrb[0].mxu0
      %v485 = vadd.f32 %v248, %v484
      %486 = vmatprep.mubr.f32.mxu0 0.0
      %487 = vmatmul.mubr.f32.gmra.mrb[0].mxu0 %v299
      %v488 = vpop.f32.mrb[0].mxu0
      %v489 = vadd.f32 %v244, %v488
      %v490 = vpop.f32.mrb[0].mxu0
      %v491 = vadd.f32 %v248, %v490
      %492 = vmatprep.mubr.f32.mxu0 0.0
      %493 = vmatmul.mubr.f32.gmra.mrb[0].mxu0 %v302
      %v494 = vpop.f32.mrb[0].mxu0
      %v495 = vadd.f32 %v244, %v494
      %v496 = vpop.f32.mrb[0].mxu0
      %v497 = vadd.f32 %v248, %v496
      %498 = vmatprep.mubr.f32.mxu0 0.0
      %499 = vmatmul.mubr.f32.gmra.mrb[0].mxu0 %v305
      %v500 = vpop.f32.mrb[0].mxu0
      %v501 = vadd.f32 %v244, %v500
      %v502 = vpop.f32.mrb[0].mxu0
      %v503 = vadd.f32 %v248, %v502
      %504 = vmatprep.mubr.f32.mxu0 0.0
      %505 = vmatmul.mubr.f32.gmra.mrb[0].mxu0 %v308
      %v506 = vpop.f32.mrb[0].mxu0
      %v507 = vadd.f32 %v244, %v506
      %v508 = vpop.f32.mrb[0].mxu0
      %v509 = vadd.f32 %v248, %v508
      %510 = vmatprep.mubr.f32.mxu0 0.0
      %511 = vmatmul.mubr.f32.gmra.mrb[0].mxu0 %v311
      %v512 = vpop.f32.mrb[0].mxu0
      %v513 = vadd.f32 %v244, %v512
      %v514 = vpop.f32.mrb[0].mxu0
      %v515 = vadd.f32 %v248, %v514
      %516 = vmatprep.mubr.f32.mxu0 0.0
      %517 = vmatmul.mubr.f32.gmra.mrb[0].mxu0 %v314
      %v518 = vpop.f32.mrb[0].mxu0
      %v519 = vadd.f32 %v244, %v518
      %v520 = vpop.f32.mrb[0].mxu0
      %v521 = vadd.f32 %v248, %v520
      %522 = vmatprep.mubr.f32.mxu0 0.0
      %523 = vmatmul.mubr.f32.gmra.mrb[0].mxu0 %v317
      %v524 = vpop.f32.mrb[0].mxu0
      %v525 = vadd.f32 %v244, %v524
      %v526 = vpop.f32.mrb[0].mxu0
      %v527 = vadd.f32 %v248, %v526
      %528 = vmatprep.mubr.f32.mxu0 0.0
      %529 = vmatmul.mubr.f32.gmra.mrb[0].mxu0 %v320
      %v530 = vpop.f32.mrb[0].mxu0
      %v531 = vadd.f32 %v244, %v530
      %v532 = vpop.f32.mrb[0].mxu0
      %v533 = vadd.f32 %v248, %v532
      %534 = vmatprep.mubr.f32.mxu0 0.0
      %535 = vmatmul.mubr.f32.gmra.mrb[0].mxu0 %v323
      %v536 = vpop.f32.mrb[0].mxu0
      %v537 = vadd.f32 %v244, %v536
      %v538 = vpop.f32.mrb[0].mxu0
      %v539 = vadd.f32 %v248, %v538
      %540 = vmatprep.mubr.f32.mxu0 0.0
      %541 = vmatmul.mubr.f32.gmra.mrb[0].mxu0 %v326
      %v542 = vpop.f32.mrb[0].mxu0
      %v543 = vadd.f32 %v244, %v542
      %v544 = vpop.f32.mrb[0].mxu0
      %v545 = vadd.f32 %v248, %v544
      %546 = vmatprep.mubr.f32.mxu0 0.0
      %547 = vmatmul.mubr.f32.gmra.mrb[0].mxu0 %v329
      %v548 = vpop.f32.mrb[0].mxu0
      %v549 = vadd.f32 %v244, %v548
      %v550 = vpop.f32.mrb[0].mxu0
      %v551 = vadd.f32 %v248, %v550
      %552 = vmatprep.mubr.f32.mxu0 0.0
      %553 = vmatmul.mubr.f32.gmra.mrb[0].mxu0 %v332
      %v554 = vpop.f32.mrb[0].mxu0
      %v555 = vadd.f32 %v244, %v554
      %v556 = vpop.f32.mrb[0].mxu0
      %v557 = vadd.f32 %v248, %v556
      %558 = vmatprep.mubr.f32.mxu0 0.0
      %559 = vmatmul.mubr.f32.gmra.mrb[0].mxu0 %v335
      %v560 = vpop.f32.mrb[0].mxu0
      %v561 = vadd.f32 %v244, %v560
      %v562 = vpop.f32.mrb[0].mxu0
      %v563 = vadd.f32 %v248, %v562
      %564 = vdwg.mxu0
      %565 = vmatprep.subr.mxu0 %v226
      %566 = vmatpush1.msra.mxu0 %v225
      %567 = vmatprep.subr.mxu0 %v230
      %568 = vmatpush1.msra.mxu0 %v229
      %569 = vmatprep.subr.mxu0 %v234
      %570 = vmatpush1.msra.mxu0 %v233
      %571 = vmatprep.subr.mxu0 %v348
      %572 = vmatpush1.msra.mxu0 %v345
      %573 = vmatprep.subr.mxu0 0.0
      %574 = vmatpush1.msra.mxu0 0.0
      %575 = vmatprep.subr.mxu0 0.0
      %576 = vmatpush1.msra.mxu0 0.0
      %577 = vmatprep.subr.mxu0 0.0
      %578 = vmatpush1.msra.mxu0 0.0
      %579 = vmatprep.subr.mxu0 0.0
      %580 = vmatpush1.msra.mxu0 0.0
      %581 = vmatprep.subr.mxu0 0.0
      %582 = vmatpush1.msra.mxu0 0.0
      %583 = vmatprep.subr.mxu0 0.0
      %584 = vmatpush1.msra.mxu0 0.0
      %585 = vmatprep.subr.mxu0 0.0
      %586 = vmatpush1.msra.mxu0 0.0
      %587 = vmatprep.subr.mxu0 0.0
      %588 = vmatpush1.msra.mxu0 0.0
      %589 = vmatprep.subr.mxu0 0.0
      %590 = vmatpush1.msra.mxu0 0.0
      %591 = vmatprep.subr.mxu0 0.0
      %592 = vmatpush1.msra.mxu0 0.0
      %593 = vmatprep.subr.mxu0 0.0
      %594 = vmatpush1.msra.mxu0 0.0
      %595 = vmatprep.subr.mxu0 0.0
      %596 = vmatpush1.msra.mxu0 0.0
      %597 = vmatprep.subr.mxu0 0.0
      %598 = vmatpush1.msra.mxu0 0.0
      %599 = vmatprep.subr.mxu0 0.0
      %600 = vmatpush1.msra.mxu0 0.0
      %601 = vmatprep.subr.mxu0 0.0
      %602 = vmatpush1.msra.mxu0 0.0
      %603 = vmatprep.subr.mxu0 0.0
      %604 = vmatpush1.msra.mxu0 0.0
      %605 = vmatprep.subr.mxu0 0.0
      %606 = vmatpush1.msra.mxu0 0.0
      %607 = vmatprep.subr.mxu0 0.0
      %608 = vmatpush1.msra.mxu0 0.0
      %609 = vmatprep.subr.mxu0 0.0
      %610 = vmatpush1.msra.mxu0 0.0
      %611 = vmatprep.subr.mxu0 0.0
      %612 = vmatpush1.msra.mxu0 0.0
      %613 = vmatprep.subr.mxu0 0.0
      %614 = vmatpush1.msra.mxu0 0.0
      %615 = vmatprep.subr.mxu0 0.0
      %616 = vmatpush1.msra.mxu0 0.0
      %617 = vmatprep.subr.mxu0 0.0
      %618 = vmatpush1.msra.mxu0 0.0
      %619 = vmatprep.subr.mxu0 0.0
      %620 = vmatpush1.msra.mxu0 0.0
      %621 = vmatprep.subr.mxu0 0.0
      %622 = vmatpush1.msra.mxu0 0.0
      %623 = vmatprep.subr.mxu0 0.0
      %624 = vmatpush1.msra.mxu0 0.0
      %625 = vmatprep.subr.mxu0 0.0
      %626 = vmatpush1.msra.mxu0 0.0
      %627 = vmatprep.subr.mxu0 0.0
      %628 = vmatpush1.msra.mxu0 0.0
      %629 = vmatprep.mubr.f32.mxu0 0.0
      %630 = vmatmul.mubr.f32.gmra.mrb[0].mxu0 %v263
      %v631 = vpop.f32.mrb[0].mxu0
      %v632 = vadd.f32 %v252, %v631
      %v633 = vpop.f32.mrb[0].mxu0
      %v634 = vadd.f32 %v256, %v633
      %635 = vmatprep.mubr.f32.mxu0 0.0
      %636 = vmatmul.mubr.f32.gmra.mrb[0].mxu0 %v266
      %v637 = vpop.f32.mrb[0].mxu0
      %v638 = vadd.f32 %v252, %v637
      %v639 = vpop.f32.mrb[0].mxu0
      %v640 = vadd.f32 %v256, %v639
      %641 = vmatprep.mubr.f32.mxu0 0.0
      %642 = vmatmul.mubr.f32.gmra.mrb[0].mxu0 %v269
      %v643 = vpop.f32.mrb[0].mxu0
      %v644 = vadd.f32 %v252, %v643
      %v645 = vpop.f32.mrb[0].mxu0
      %v646 = vadd.f32 %v256, %v645
      %647 = vmatprep.mubr.f32.mxu0 0.0
      %648 = vmatmul.mubr.f32.gmra.mrb[0].mxu0 %v272
      %v649 = vpop.f32.mrb[0].mxu0
      %v650 = vadd.f32 %v252, %v649
      %v651 = vpop.f32.mrb[0].mxu0
      %v652 = vadd.f32 %v256, %v651
      %653 = vmatprep.mubr.f32.mxu0 0.0
      %654 = vmatmul.mubr.f32.gmra.mrb[0].mxu0 %v275
      %v655 = vpop.f32.mrb[0].mxu0
      %v656 = vadd.f32 %v252, %v655
      %v657 = vpop.f32.mrb[0].mxu0
      %v658 = vadd.f32 %v256, %v657
      %659 = vmatprep.mubr.f32.mxu0 0.0
      %660 = vmatmul.mubr.f32.gmra.mrb[0].mxu0 %v278
      %v661 = vpop.f32.mrb[0].mxu0
      %v662 = vadd.f32 %v252, %v661
      %v663 = vpop.f32.mrb[0].mxu0
      %v664 = vadd.f32 %v256, %v663
      %665 = vmatprep.mubr.f32.mxu0 0.0
      %666 = vmatmul.mubr.f32.gmra.mrb[0].mxu0 %v281
      %v667 = vpop.f32.mrb[0].mxu0
      %v668 = vadd.f32 %v252, %v667
      %v669 = vpop.f32.mrb[0].mxu0
      %v670 = vadd.f32 %v256, %v669
      %671 = vmatprep.mubr.f32.mxu0 0.0
      %672 = vmatmul.mubr.f32.gmra.mrb[0].mxu0 %v284
      %v673 = vpop.f32.mrb[0].mxu0
      %v674 = vadd.f32 %v252, %v673
      %v675 = vpop.f32.mrb[0].mxu0
      %v676 = vadd.f32 %v256, %v675
      %677 = vmatprep.mubr.f32.mxu0 0.0
      %678 = vmatmul.mubr.f32.gmra.mrb[0].mxu0 %v287
      %v679 = vpop.f32.mrb[0].mxu0
      %v680 = vadd.f32 %v252, %v679
      %v681 = vpop.f32.mrb[0].mxu0
      %v682 = vadd.f32 %v256, %v681
      %683 = vmatprep.mubr.f32.mxu0 0.0
      %684 = vmatmul.mubr.f32.gmra.mrb[0].mxu0 %v290
      %v685 = vpop.f32.mrb[0].mxu0
      %v686 = vadd.f32 %v252, %v685
      %v687 = vpop.f32.mrb[0].mxu0
      %v688 = vadd.f32 %v256, %v687
      %689 = vmatprep.mubr.f32.mxu0 0.0
      %690 = vmatmul.mubr.f32.gmra.mrb[0].mxu0 %v293
      %v691 = vpop.f32.mrb[0].mxu0
      %v692 = vadd.f32 %v252, %v691
      %v693 = vpop.f32.mrb[0].mxu0
      %v694 = vadd.f32 %v256, %v693
      %695 = vmatprep.mubr.f32.mxu0 0.0
      %696 = vmatmul.mubr.f32.gmra.mrb[0].mxu0 %v296
      %v697 = vpop.f32.mrb[0].mxu0
      %v698 = vadd.f32 %v252, %v697
      %v699 = vpop.f32.mrb[0].mxu0
      %v700 = vadd.f32 %v256, %v699
      %701 = vmatprep.mubr.f32.mxu0 0.0
      %702 = vmatmul.mubr.f32.gmra.mrb[0].mxu0 %v299
      %v703 = vpop.f32.mrb[0].mxu0
      %v704 = vadd.f32 %v252, %v703
      %v705 = vpop.f32.mrb[0].mxu0
      %v706 = vadd.f32 %v256, %v705
      %707 = vmatprep.mubr.f32.mxu0 0.0
      %708 = vmatmul.mubr.f32.gmra.mrb[0].mxu0 %v302
      %v709 = vpop.f32.mrb[0].mxu0
      %v710 = vadd.f32 %v252, %v709
      %v711 = vpop.f32.mrb[0].mxu0
      %v712 = vadd.f32 %v256, %v711
      %713 = vmatprep.mubr.f32.mxu0 0.0
      %714 = vmatmul.mubr.f32.gmra.mrb[0].mxu0 %v305
      %v715 = vpop.f32.mrb[0].mxu0
      %v716 = vadd.f32 %v252, %v715
      %v717 = vpop.f32.mrb[0].mxu0
      %v718 = vadd.f32 %v256, %v717
      %719 = vmatprep.mubr.f32.mxu0 0.0
      %720 = vmatmul.mubr.f32.gmra.mrb[0].mxu0 %v308
      %v721 = vpop.f32.mrb[0].mxu0
      %v722 = vadd.f32 %v252, %v721
      %v723 = vpop.f32.mrb[0].mxu0
      %v724 = vadd.f32 %v256, %v723
      %725 = vmatprep.mubr.f32.mxu0 0.0
      %726 = vmatmul.mubr.f32.gmra.mrb[0].mxu0 %v311
      %v727 = vpop.f32.mrb[0].mxu0
      %v728 = vadd.f32 %v252, %v727
      %v729 = vpop.f32.mrb[0].mxu0
      %v730 = vadd.f32 %v256, %v729
      %731 = vmatprep.mubr.f32.mxu0 0.0
      %732 = vmatmul.mubr.f32.gmra.mrb[0].mxu0 %v314
      %v733 = vpop.f32.mrb[0].mxu0
      %v734 = vadd.f32 %v252, %v733
      %v735 = vpop.f32.mrb[0].mxu0
      %v736 = vadd.f32 %v256, %v735
      %737 = vmatprep.mubr.f32.mxu0 0.0
      %738 = vmatmul.mubr.f32.gmra.mrb[0].mxu0 %v317
      %v739 = vpop.f32.mrb[0].mxu0
      %v740 = vadd.f32 %v252, %v739
      %v741 = vpop.f32.mrb[0].mxu0
      %v742 = vadd.f32 %v256, %v741
      %743 = vmatprep.mubr.f32.mxu0 0.0
      %744 = vmatmul.mubr.f32.gmra.mrb[0].mxu0 %v320
      %v745 = vpop.f32.mrb[0].mxu0
      %v746 = vadd.f32 %v252, %v745
      %v747 = vpop.f32.mrb[0].mxu0
      %v748 = vadd.f32 %v256, %v747
      %749 = vmatprep.mubr.f32.mxu0 0.0
      %750 = vmatmul.mubr.f32.gmra.mrb[0].mxu0 %v323
      %v751 = vpop.f32.mrb[0].mxu0
      %v752 = vadd.f32 %v252, %v751
      %v753 = vpop.f32.mrb[0].mxu0
      %v754 = vadd.f32 %v256, %v753
      %755 = vmatprep.mubr.f32.mxu0 0.0
      %756 = vmatmul.mubr.f32.gmra.mrb[0].mxu0 %v326
      %v757 = vpop.f32.mrb[0].mxu0
      %v758 = vadd.f32 %v252, %v757
      %v759 = vpop.f32.mrb[0].mxu0
      %v760 = vadd.f32 %v256, %v759
      %761 = vmatprep.mubr.f32.mxu0 0.0
      %762 = vmatmul.mubr.f32.gmra.mrb[0].mxu0 %v329
      %v763 = vpop.f32.mrb[0].mxu0
      %v764 = vadd.f32 %v252, %v763
      %v765 = vpop.f32.mrb[0].mxu0
      %v766 = vadd.f32 %v256, %v765
      %767 = vmatprep.mubr.f32.mxu0 0.0
      %768 = vmatmul.mubr.f32.gmra.mrb[0].mxu0 %v332
      %v769 = vpop.f32.mrb[0].mxu0
      %v770 = vadd.f32 %v252, %v769
      %v771 = vpop.f32.mrb[0].mxu0
      %v772 = vadd.f32 %v256, %v771
      %773 = vmatprep.mubr.f32.mxu0 0.0
      %774 = vmatmul.mubr.f32.gmra.mrb[0].mxu0 %v335
      %v775 = vpop.f32.mrb[0].mxu0
      %v776 = vadd.f32 %v252, %v775
      %v777 = vpop.f32.mrb[0].mxu0
      %v778 = vadd.f32 %v256, %v777
      %779 = vdwg.mxu0
      %v780 = vmax.f32 %v417, 0.0
      %v781 = vmax.f32 %v419, 0.0
      %v782 = vmax.f32 %v632, 0.0
      %v783 = vmax.f32 %v634, 0.0
      %v784 = vmax.f32 %v423, 0.0
      %v785 = vmax.f32 %v425, 0.0
      %v786 = vmax.f32 %v638, 0.0
      %v787 = vmax.f32 %v640, 0.0
      %v788 = vmax.f32 %v429, 0.0
      %v789 = vmax.f32 %v431, 0.0
      %v790 = vmax.f32 %v644, 0.0
      %v791 = vmax.f32 %v646, 0.0
      %v792 = vmax.f32 %v435, 0.0
      %v793 = vmax.f32 %v437, 0.0
      %v794 = vmax.f32 %v650, 0.0
      %v795 = vmax.f32 %v652, 0.0
      %v796 = vmax.f32 %v441, 0.0
      %v797 = vmax.f32 %v443, 0.0
      %v798 = vmax.f32 %v656, 0.0
      %v799 = vmax.f32 %v658, 0.0
      %v800 = vmax.f32 %v447, 0.0
      %v801 = vmax.f32 %v449, 0.0
      %v802 = vmax.f32 %v662, 0.0
      %v803 = vmax.f32 %v664, 0.0
      %v804 = vmax.f32 %v453, 0.0
      %v805 = vmax.f32 %v455, 0.0
      %v806 = vmax.f32 %v668, 0.0
      %v807 = vmax.f32 %v670, 0.0
      %v808 = vmax.f32 %v459, 0.0
      %v809 = vmax.f32 %v461, 0.0
      %v810 = vmax.f32 %v674, 0.0
      %v811 = vmax.f32 %v676, 0.0
      %v812 = vmax.f32 %v465, 0.0
      %v813 = vmax.f32 %v467, 0.0
      %v814 = vmax.f32 %v680, 0.0
      %v815 = vmax.f32 %v682, 0.0
      %v816 = vmax.f32 %v471, 0.0
      %v817 = vmax.f32 %v473, 0.0
      %v818 = vmax.f32 %v686, 0.0
      %v819 = vmax.f32 %v688, 0.0
      %v820 = vmax.f32 %v477, 0.0
      %v821 = vmax.f32 %v479, 0.0
      %v822 = vmax.f32 %v692, 0.0
      %v823 = vmax.f32 %v694, 0.0
      %v824 = vmax.f32 %v483, 0.0
      %v825 = vmax.f32 %v485, 0.0
      %v826 = vmax.f32 %v698, 0.0
      %v827 = vmax.f32 %v700, 0.0
      %v828 = vmax.f32 %v489, 0.0
      %v829 = vmax.f32 %v491, 0.0
      %v830 = vmax.f32 %v704, 0.0
      %v831 = vmax.f32 %v706, 0.0
      %v832 = vmax.f32 %v495, 0.0
      %v833 = vmax.f32 %v497, 0.0
      %v834 = vmax.f32 %v710, 0.0
      %v835 = vmax.f32 %v712, 0.0
      %v836 = vmax.f32 %v501, 0.0
      %v837 = vmax.f32 %v503, 0.0
      %v838 = vmax.f32 %v716, 0.0
      %v839 = vmax.f32 %v718, 0.0
      %v840 = vmax.f32 %v507, 0.0
      %v841 = vmax.f32 %v509, 0.0
      %v842 = vmax.f32 %v722, 0.0
      %v843 = vmax.f32 %v724, 0.0
      %v844 = vmax.f32 %v513, 0.0
      %v845 = vmax.f32 %v515, 0.0
      %v846 = vmax.f32 %v728, 0.0
      %v847 = vmax.f32 %v730, 0.0
      %v848 = vmax.f32 %v519, 0.0
      %v849 = vmax.f32 %v521, 0.0
      %v850 = vmax.f32 %v734, 0.0
      %v851 = vmax.f32 %v736, 0.0
      %v852 = vmax.f32 %v525, 0.0
      %v853 = vmax.f32 %v527, 0.0
      %v854 = vmax.f32 %v740, 0.0
      %v855 = vmax.f32 %v742, 0.0
      %v856 = vmax.f32 %v531, 0.0
      %v857 = vmax.f32 %v533, 0.0
      %v858 = vmax.f32 %v746, 0.0
      %v859 = vmax.f32 %v748, 0.0
      %v860 = vmax.f32 %v537, 0.0
      %v861 = vmax.f32 %v539, 0.0
      %v862 = vmax.f32 %v752, 0.0
      %v863 = vmax.f32 %v754, 0.0
      %v864 = vmax.f32 %v543, 0.0
      %v865 = vmax.f32 %v545, 0.0
      %v866 = vmax.f32 %v758, 0.0
      %v867 = vmax.f32 %v760, 0.0
      %v868 = vmax.f32 %v549, 0.0
      %v869 = vmax.f32 %v551, 0.0
      %v870 = vmax.f32 %v764, 0.0
      %v871 = vmax.f32 %v766, 0.0
      %v872 = vmax.f32 %v555, 0.0
      %v873 = vmax.f32 %v557, 0.0
      %v874 = vmax.f32 %v770, 0.0
      %v875 = vmax.f32 %v772, 0.0
      %v876 = vmax.f32 %v561, 0.0
      %v877 = vmax.f32 %v563, 0.0
      %v878 = vmax.f32 %v776, 0.0
      %v879 = vmax.f32 %v778, 0.0
      %v880 = vld [vmem:[%s3] sm:$0xff]
      %v881 = vld [vmem:[%s3 + $0x8] sm:$0xff]
      %v882 = vld [vmem:[%s3 + $0x10] sm:$0xff]
      %v883 = vld [vmem:[%s3 + $0x18] sm:$0xff]
      %v884 = vld [vmem:[%s3 + $0x20] sm:$0xff]
      %v885 = vld [vmem:[%s3 + $0x28] sm:$0xff]
      %v886 = vld [vmem:[%s3 + $0x30] sm:$0xff]
      %v887 = vld [vmem:[%s3 + $0x38] sm:$0xff]
      %v888 = vld [vmem:[%s3 + $0x40] sm:$0xff]
      %v889 = vld [vmem:[%s3 + $0x48] sm:$0xff]
      %v890 = vld [vmem:[%s3 + $0x50] sm:$0xff]
      %v891 = vld [vmem:[%s3 + $0x58] sm:$0xff]
      %v892 = vld [vmem:[%s3 + $0x60] sm:$0x1]
      %v893 = vld [vmem:[%s3 + $0x68] sm:$0x1]
      %vm894 = vcmask 556032
      %v896 = vsel %vm894, %v881, 0
      %v899 = vsel %vm894, %v883, 0
      %v902 = vsel %vm894, %v885, 0
      %v905 = vsel %vm894, %v887, 0
      %v908 = vsel %vm894, %v889, 0
      %v911 = vsel %vm894, %v891, 0
      %v914 = vsel %vm894, %v893, 0
      %vm916 = vcmask 1043456
      %v918 = vsel %vm916, %v876, 0
      %v921 = vsel %vm916, %v877, 0
      %v924 = vsel %vm916, %v878, 0
      %v927 = vsel %vm916, %v879, 0
      %929 = vmatprep.subr.mxu0 %v781
      %930 = vmatpush1.msra.mxu0 %v780
      %931 = vmatprep.subr.mxu0 %v785
      %932 = vmatpush1.msra.mxu0 %v784
      %933 = vmatprep.subr.mxu0 %v789
      %934 = vmatpush1.msra.mxu0 %v788
      %935 = vmatprep.subr.mxu0 %v793
      %936 = vmatpush1.msra.mxu0 %v792
      %937 = vmatprep.subr.mxu0 %v797
      %938 = vmatpush1.msra.mxu0 %v796
      %939 = vmatprep.subr.mxu0 %v801
      %940 = vmatpush1.msra.mxu0 %v800
      %941 = vmatprep.subr.mxu0 %v805
      %942 = vmatpush1.msra.mxu0 %v804
      %943 = vmatprep.subr.mxu0 %v809
      %944 = vmatpush1.msra.mxu0 %v808
      %945 = vmatprep.subr.mxu0 %v813
      %946 = vmatpush1.msra.mxu0 %v812
      %947 = vmatprep.subr.mxu0 %v817
      %948 = vmatpush1.msra.mxu0 %v816
      %949 = vmatprep.subr.mxu0 %v821
      %950 = vmatpush1.msra.mxu0 %v820
      %951 = vmatprep.subr.mxu0 %v825
      %952 = vmatpush1.msra.mxu0 %v824
      %953 = vmatprep.subr.mxu0 %v829
      %954 = vmatpush1.msra.mxu0 %v828
      %955 = vmatprep.subr.mxu0 %v833
      %956 = vmatpush1.msra.mxu0 %v832
      %957 = vmatprep.subr.mxu0 %v837
      %958 = vmatpush1.msra.mxu0 %v836
      %959 = vmatprep.subr.mxu0 %v841
      %960 = vmatpush1.msra.mxu0 %v840
      %961 = vmatprep.subr.mxu0 %v845
      %962 = vmatpush1.msra.mxu0 %v844
      %963 = vmatprep.subr.mxu0 %v849
      %964 = vmatpush1.msra.mxu0 %v848
      %965 = vmatprep.subr.mxu0 %v853
      %966 = vmatpush1.msra.mxu0 %v852
      %967 = vmatprep.subr.mxu0 %v857
      %968 = vmatpush1.msra.mxu0 %v856
      %969 = vmatprep.subr.mxu0 %v861
      %970 = vmatpush1.msra.mxu0 %v860
      %971 = vmatprep.subr.mxu0 %v865
      %972 = vmatpush1.msra.mxu0 %v864
      %973 = vmatprep.subr.mxu0 %v869
      %974 = vmatpush1.msra.mxu0 %v868
      %975 = vmatprep.subr.mxu0 %v873
      %976 = vmatpush1.msra.mxu0 %v872
      %977 = vmatprep.subr.mxu0 %v921
      %978 = vmatpush1.msra.mxu0 %v918
      %979 = vmatprep.subr.mxu0 0.0
      %980 = vmatpush1.msra.mxu0 0.0
      %981 = vmatprep.subr.mxu0 0.0
      %982 = vmatpush1.msra.mxu0 0.0
      %983 = vmatprep.subr.mxu0 0.0
      %984 = vmatpush1.msra.mxu0 0.0
      %985 = vmatprep.subr.mxu0 0.0
      %986 = vmatpush1.msra.mxu0 0.0
      %987 = vmatprep.subr.mxu0 0.0
      %988 = vmatpush1.msra.mxu0 0.0
      %989 = vmatprep.subr.mxu0 0.0
      %990 = vmatpush1.msra.mxu0 0.0
      %991 = vmatprep.subr.mxu0 0.0
      %992 = vmatpush1.msra.mxu0 0.0
      %993 = vmatprep.mubr.f32.mxu0 %v896
      %994 = vmatmul.mubr.f32.gmra.mrb[0].mxu0 %v880
      %v995 = vpop.f32.mrb[0].mxu0
      %v996 = vadd.f32 0.0, %v995
      %v997 = vpop.f32.mrb[0].mxu0
      %v998 = vadd.f32 0.0, %v997
      %999 = vmatprep.mubr.f32.mxu0 %v899
      %1000 = vmatmul.mubr.f32.gmra.mrb[0].mxu0 %v882
      %v1001 = vpop.f32.mrb[0].mxu0
      %v1002 = vadd.f32 0.0, %v1001
      %v1003 = vpop.f32.mrb[0].mxu0
      %v1004 = vadd.f32 0.0, %v1003
      %1005 = vmatprep.mubr.f32.mxu0 %v902
      %1006 = vmatmul.mubr.f32.gmra.mrb[0].mxu0 %v884
      %v1007 = vpop.f32.mrb[0].mxu0
      %v1008 = vadd.f32 0.0, %v1007
      %v1009 = vpop.f32.mrb[0].mxu0
      %v1010 = vadd.f32 0.0, %v1009
      %1011 = vmatprep.mubr.f32.mxu0 %v905
      %1012 = vmatmul.mubr.f32.gmra.mrb[0].mxu0 %v886
      %v1013 = vpop.f32.mrb[0].mxu0
      %v1014 = vadd.f32 0.0, %v1013
      %v1015 = vpop.f32.mrb[0].mxu0
      %v1016 = vadd.f32 0.0, %v1015
      %1017 = vmatprep.mubr.f32.mxu0 %v908
      %1018 = vmatmul.mubr.f32.gmra.mrb[0].mxu0 %v888
      %v1019 = vpop.f32.mrb[0].mxu0
      %v1020 = vadd.f32 0.0, %v1019
      %v1021 = vpop.f32.mrb[0].mxu0
      %v1022 = vadd.f32 0.0, %v1021
      %1023 = vmatprep.mubr.f32.mxu0 %v911
      %1024 = vmatmul.mubr.f32.gmra.mrb[0].mxu0 %v890
      %v1025 = vpop.f32.mrb[0].mxu0
      %v1026 = vadd.f32 0.0, %v1025
      %v1027 = vpop.f32.mrb[0].mxu0
      %v1028 = vadd.f32 0.0, %v1027
      %1029 = vmatprep.mubr.f32.mxu0 %v914
      %1030 = vmatmul.mubr.f32.gmra.mrb[0].mxu0 %v892
      %v1031 = vpop.f32.mrb[0].mxu0
      %v1032 = vadd.f32 0.0, %v1031
      %v1033 = vpop.f32.mrb[0].mxu0
      %v1034 = vadd.f32 0.0, %v1033
      %1035 = vdwg.mxu0
      %1036 = vmatprep.subr.mxu0 %v783
      %1037 = vmatpush1.msra.mxu0 %v782
      %1038 = vmatprep.subr.mxu0 %v787
      %1039 = vmatpush1.msra.mxu0 %v786
      %1040 = vmatprep.subr.mxu0 %v791
      %1041 = vmatpush1.msra.mxu0 %v790
      %1042 = vmatprep.subr.mxu0 %v795
      %1043 = vmatpush1.msra.mxu0 %v794
      %1044 = vmatprep.subr.mxu0 %v799
      %1045 = vmatpush1.msra.mxu0 %v798
      %1046 = vmatprep.subr.mxu0 %v803
      %1047 = vmatpush1.msra.mxu0 %v802
      %1048 = vmatprep.subr.mxu0 %v807
      %1049 = vmatpush1.msra.mxu0 %v806
      %1050 = vmatprep.subr.mxu0 %v811
      %1051 = vmatpush1.msra.mxu0 %v810
      %1052 = vmatprep.subr.mxu0 %v815
      %1053 = vmatpush1.msra.mxu0 %v814
      %1054 = vmatprep.subr.mxu0 %v819
      %1055 = vmatpush1.msra.mxu0 %v818
      %1056 = vmatprep.subr.mxu0 %v823
      %1057 = vmatpush1.msra.mxu0 %v822
      %1058 = vmatprep.subr.mxu0 %v827
      %1059 = vmatpush1.msra.mxu0 %v826
      %1060 = vmatprep.subr.mxu0 %v831
      %1061 = vmatpush1.msra.mxu0 %v830
      %1062 = vmatprep.subr.mxu0 %v835
      %1063 = vmatpush1.msra.mxu0 %v834
      %1064 = vmatprep.subr.mxu0 %v839
      %1065 = vmatpush1.msra.mxu0 %v838
      %1066 = vmatprep.subr.mxu0 %v843
      %1067 = vmatpush1.msra.mxu0 %v842
      %1068 = vmatprep.subr.mxu0 %v847
      %1069 = vmatpush1.msra.mxu0 %v846
      %1070 = vmatprep.subr.mxu0 %v851
      %1071 = vmatpush1.msra.mxu0 %v850
      %1072 = vmatprep.subr.mxu0 %v855
      %1073 = vmatpush1.msra.mxu0 %v854
      %1074 = vmatprep.subr.mxu0 %v859
      %1075 = vmatpush1.msra.mxu0 %v858
      %1076 = vmatprep.subr.mxu0 %v863
      %1077 = vmatpush1.msra.mxu0 %v862
      %1078 = vmatprep.subr.mxu0 %v867
      %1079 = vmatpush1.msra.mxu0 %v866
      %1080 = vmatprep.subr.mxu0 %v871
      %1081 = vmatpush1.msra.mxu0 %v870
      %1082 = vmatprep.subr.mxu0 %v875
      %1083 = vmatpush1.msra.mxu0 %v874
      %1084 = vmatprep.subr.mxu0 %v927
      %1085 = vmatpush1.msra.mxu0 %v924
      %1086 = vmatprep.subr.mxu0 0.0
      %1087 = vmatpush1.msra.mxu0 0.0
      %1088 = vmatprep.subr.mxu0 0.0
      %1089 = vmatpush1.msra.mxu0 0.0
      %1090 = vmatprep.subr.mxu0 0.0
      %1091 = vmatpush1.msra.mxu0 0.0
      %1092 = vmatprep.subr.mxu0 0.0
      %1093 = vmatpush1.msra.mxu0 0.0
      %1094 = vmatprep.subr.mxu0 0.0
      %1095 = vmatpush1.msra.mxu0 0.0
      %1096 = vmatprep.subr.mxu0 0.0
      %1097 = vmatpush1.msra.mxu0 0.0
      %1098 = vmatprep.subr.mxu0 0.0
      %1099 = vmatpush1.msra.mxu0 0.0
      %1100 = vmatprep.mubr.f32.mxu0 %v896
      %1101 = vmatmul.mubr.f32.gmra.mrb[0].mxu0 %v880
      %v1102 = vpop.f32.mrb[0].mxu0
      %v1103 = vadd.f32 0.0, %v1102
      %v1104 = vpop.f32.mrb[0].mxu0
      %v1105 = vadd.f32 0.0, %v1104
      %1106 = vmatprep.mubr.f32.mxu0 %v899
      %1107 = vmatmul.mubr.f32.gmra.mrb[0].mxu0 %v882
      %v1108 = vpop.f32.mrb[0].mxu0
      %v1109 = vadd.f32 0.0, %v1108
      %v1110 = vpop.f32.mrb[0].mxu0
      %v1111 = vadd.f32 0.0, %v1110
      %1112 = vmatprep.mubr.f32.mxu0 %v902
      %1113 = vmatmul.mubr.f32.gmra.mrb[0].mxu0 %v884
      %v1114 = vpop.f32.mrb[0].mxu0
      %v1115 = vadd.f32 0.0, %v1114
      %v1116 = vpop.f32.mrb[0].mxu0
      %v1117 = vadd.f32 0.0, %v1116
      %1118 = vmatprep.mubr.f32.mxu0 %v905
      %1119 = vmatmul.mubr.f32.gmra.mrb[0].mxu0 %v886
      %v1120 = vpop.f32.mrb[0].mxu0
      %v1121 = vadd.f32 0.0, %v1120
      %v1122 = vpop.f32.mrb[0].mxu0
      %v1123 = vadd.f32 0.0, %v1122
      %1124 = vmatprep.mubr.f32.mxu0 %v908
      %1125 = vmatmul.mubr.f32.gmra.mrb[0].mxu0 %v888
      %v1126 = vpop.f32.mrb[0].mxu0
      %v1127 = vadd.f32 0.0, %v1126
      %v1128 = vpop.f32.mrb[0].mxu0
      %v1129 = vadd.f32 0.0, %v1128
      %1130 = vmatprep.mubr.f32.mxu0 %v911
      %1131 = vmatmul.mubr.f32.gmra.mrb[0].mxu0 %v890
      %v1132 = vpop.f32.mrb[0].mxu0
      %v1133 = vadd.f32 0.0, %v1132
      %v1134 = vpop.f32.mrb[0].mxu0
      %v1135 = vadd.f32 0.0, %v1134
      %1136 = vmatprep.mubr.f32.mxu0 %v914
      %1137 = vmatmul.mubr.f32.gmra.mrb[0].mxu0 %v892
      %v1138 = vpop.f32.mrb[0].mxu0
      %v1139 = vadd.f32 0.0, %v1138
      %v1140 = vpop.f32.mrb[0].mxu0
      %v1141 = vadd.f32 0.0, %v1140
      %1142 = vdwg.mxu0
      %v1143 = vpack.c.bf16 %v1002, %v996
      %v1144 = vpack.c.bf16 %v1004, %v998
      %v1145 = vpack.c.bf16 %v1109, %v1103
      %v1146 = vpack.c.bf16 %v1111, %v1105
      %v1147 = vpack.c.bf16 %v1014, %v1008
      %v1148 = vpack.c.bf16 %v1016, %v1010
      %v1149 = vpack.c.bf16 %v1121, %v1115
      %v1150 = vpack.c.bf16 %v1123, %v1117
      %v1151 = vpack.c.bf16 %v1026, %v1020
      %v1152 = vpack.c.bf16 %v1028, %v1022
      %v1153 = vpack.c.bf16 %v1133, %v1127
      %v1154 = vpack.c.bf16 %v1135, %v1129
      %v1155 = vpack.c.bf16 %v1032, %v1032
      %v1156 = vpack.c.bf16 %v1034, %v1034
      %v1157 = vpack.c.bf16 %v1139, %v1139
      %v1158 = vpack.c.bf16 %v1141, %v1141
      %v1175 = vunpack.c.l.b16 %v1143
      %v1176 = vunpack.c.l.b16 %v1144
      %v1177 = vunpack.c.l.b16 %v1145
      %v1178 = vunpack.c.l.b16 %v1146
      %v1179 = vunpack.c.h.b16 %v1143
      %v1180 = vunpack.c.h.b16 %v1144
      %v1181 = vunpack.c.h.b16 %v1145
      %v1182 = vunpack.c.h.b16 %v1146
      %v1183 = vunpack.c.l.b16 %v1147
      %v1184 = vunpack.c.l.b16 %v1148
      %v1185 = vunpack.c.l.b16 %v1149
      %v1186 = vunpack.c.l.b16 %v1150
      %v1187 = vunpack.c.h.b16 %v1147
      %v1188 = vunpack.c.h.b16 %v1148
      %v1189 = vunpack.c.h.b16 %v1149
      %v1190 = vunpack.c.h.b16 %v1150
      %v1191 = vunpack.c.l.b16 %v1151
      %v1192 = vunpack.c.l.b16 %v1152
      %v1193 = vunpack.c.l.b16 %v1153
      %v1194 = vunpack.c.l.b16 %v1154
      %v1195 = vunpack.c.h.b16 %v1151
      %v1196 = vunpack.c.h.b16 %v1152
      %v1197 = vunpack.c.h.b16 %v1153
      %v1198 = vunpack.c.h.b16 %v1154
      %v1199 = vunpack.c.l.b16 %v1155
      %v1200 = vunpack.c.l.b16 %v1156
      %v1201 = vunpack.c.l.b16 %v1157
      %v1202 = vunpack.c.l.b16 %v1158
      %v1203 = vpack.c.b16 %v1176, %v1175
      %v1204 = vpack.c.b16 %v1178, %v1177
      %v1205 = vpack.c.b16 %v1180, %v1179
      %v1206 = vpack.c.b16 %v1182, %v1181
      %v1207 = vpack.c.b16 %v1184, %v1183
      %v1208 = vpack.c.b16 %v1186, %v1185
      %v1209 = vpack.c.b16 %v1188, %v1187
      %v1210 = vpack.c.b16 %v1190, %v1189
      %v1211 = vpack.c.b16 %v1192, %v1191
      %v1212 = vpack.c.b16 %v1194, %v1193
      %v1213 = vpack.c.b16 %v1196, %v1195
      %v1214 = vpack.c.b16 %v1198, %v1197
      %v1215 = vpack.c.b16 %v1200, %v1199
      %v1216 = vpack.c.b16 %v1202, %v1201
      %1231 = vst [vmem:[%s197] sm:$0xff] %v1203
      %1232 = vst [vmem:[%s197 + $0x8] sm:$0xff] %v1204
      %1233 = vst [vmem:[%s197 + $0x10] sm:$0xff] %v1205
      %1234 = vst [vmem:[%s197 + $0x18] sm:$0xff] %v1206
      %1235 = vst [vmem:[%s197 + $0x20] sm:$0xff] %v1207
      %1236 = vst [vmem:[%s197 + $0x28] sm:$0xff] %v1208
      %1237 = vst [vmem:[%s197 + $0x30] sm:$0xff] %v1209
      %1238 = vst [vmem:[%s197 + $0x38] sm:$0xff] %v1210
      %1239 = vst [vmem:[%s197 + $0x40] sm:$0xff] %v1211
      %1240 = vst [vmem:[%s197 + $0x48] sm:$0xff] %v1212
      %1241 = vst [vmem:[%s197 + $0x50] sm:$0xff] %v1213
      %1242 = vst [vmem:[%s197 + $0x58] sm:$0xff] %v1214
      %vm1243 = vcmask 1040384
      %vm1244 = vsmask.f32 256
      %vm1245 = vmand %vm1243, %vm1244
      %vm1246 = vcmask 1044484
      %vm1247 = vsmask.f32 4352
      %vm1248 = vmand %vm1246, %vm1247
      %vm1249 = vmor %vm1248, %vm1245
      %v1250 = vld [vmem:[%s197 + $0x60] sm:$0x11]
      %v1251 = vsel %vm1249, %v1215, %v1250
      %1252 = vst [vmem:[%s197 + $0x60] sm:$0x11] %v1251
      %v1253 = vld [vmem:[%s197 + $0x68] sm:$0x11]
      %v1254 = vsel %vm1249, %v1216, %v1253
      %1255 = vst [vmem:[%s197 + $0x68] sm:$0x11] %v1254
      %p1256 = scmp.lt.s32.totalorder %s15, 1
      %s1257 = scalar_select %p1256, %s15, 1
      %s1258 = smul.addr %s1257, 28
      %s1259 = smul.addr %s1258, 4
      %s1260 = scalar_lea.vmem %s4, %s1259
      // Predicated region
      $region37: #{tpu_custom_call.1} parent=35 // pred_check
        %p1261 = pneg %p122
      $region38: #{tpu_custom_call.1} parent=35 // pred_check_branch
        %1263 = sbr.rel (%p1261) target = $region40
      $region39: #{tpu_custom_call.1} parent=35 // pred_region
        _
      $region40: #{tpu_custom_call.1} parent=35 // pred_fallthru
        _
    $region36: #{tpu_custom_call.1} parent=5 // pred_fallthru
      _
    %p1264 = scmp.le.s32.totalorder 2, %s10
    // Predicated region
    $region41: #{tpu_custom_call.1} parent=5 // pred_check
      %p1265 = pneg %p1264
    $region42: #{tpu_custom_call.1} parent=5 // pred_check_branch
      %1267 = sbr.rel (%p1265) target = $region44
    $region43: #{tpu_custom_call.1} parent=5 // pred_region
      %s1268 = ssub.s32 %s10, 2
      // Predicated region
      $region45: #{tpu_custom_call.1} parent=43 // pred_check
        %p1269 = pneg %p128
      $region46: #{tpu_custom_call.1} parent=43 // pred_check_branch
        %1271 = sbr.rel (%p1269) target = $region48
      $region47: #{tpu_custom_call.1} parent=43 // pred_region
        %p1272 = scmp.lt.s32.totalorder %s16, 1
        %s1273 = scalar_select %p1272, %s16, 1
        %s1274 = smul.addr %s1273, 28
        %s1275 = smul.addr %s1274, 4
        %s1276 = scalar_lea.vmem %s4, %s1275
      $region48: #{tpu_custom_call.1} parent=43 // pred_fallthru
        _
    $region44: #{tpu_custom_call.1} parent=5 // pred_fallthru
      _
  $region6: #{tpu_custom_call.1} parent=0 // loop_footer
    %s14 = sadd.s32 1, %s10
  $region7: #{tpu_custom_call.1} parent=0 // loop_footer_branch
    %9 = sbr.rel target = $region3
  $region8: #{tpu_custom_call.1} parent=0 // loop_exit
    _

</llo_original>
